<compile_context>
chip_gen: v6e
topology: v6e:2x2x1
jax: 0.10.0
libtpu: 0.0.40
codegen_flags: <defaults>
</compile_context>

<pallas_src>
import jax
import jax.numpy as jnp
from jax.experimental import pallas as pl
from jax.experimental.pallas import tpu as pltpu

_LANES = 128
_SUBLANES = 8
_TILE_BYTES = 512 * 1024            # target scores bytes per grid step (review item 2)
_SELECT_BYTES_CAP = 2 * 1024 * 1024  # cap on the (K, TS, 128) f32 select temporary


def _vmem_limit(n_bytes):
    # actual footprint * 2 headroom, clamped well under every generation's VMEM
    # (v7x has 64 MiB total per TensorCore).
    return int(min(max(2 * n_bytes, 16 * 1024 * 1024), 48 * 1024 * 1024))


# --------------------------------------------------------------------------- #
# Path 1: single-pass kernel (whole padded row in one tile, grid = (B,)).
# --------------------------------------------------------------------------- #
def _reg_l1_row_kernel(scores_ref, ind_ref, tgt_ref, loss_ref):
    # scores_ref: (1, S, 128)  one sublane-dense (padded) batch row
    # ind_ref:    (1, K, 1) int32 ; tgt_ref: (1, K, 1) f32 ; loss_ref: (1, 1, 1)
    tile = scores_ref[0].astype(jnp.float32)              # (S, 128)  cast in-kernel
    idx = ind_ref[0]                                       # (K, 1)
    tgt = tgt_ref[0].astype(jnp.float32)                   # (K, 1)
    s, lanes = tile.shape

    # global column index of every element of the row: col = sublane*128 + lane
    col = (jax.lax.broadcasted_iota(jnp.int32, (s, lanes), 0) * lanes
           + jax.lax.broadcasted_iota(jnp.int32, (s, lanes), 1))
    # select (not multiply): padded columns (>= N) can never match a valid index
    sel = jnp.where(col[None, :, :] == idx[:, :, None], tile[None, :, :], 0.0)  # (K,S,128)
    win = jnp.sum(sel, axis=1)                             # sublane reduce -> (K, 128)
    pred = jnp.sum(win, axis=1, keepdims=True)             # lane reduce     -> (K, 1)
    loss_ref[...] = jnp.sum(jnp.abs(pred - tgt), axis=0, keepdims=True)[None]


# --------------------------------------------------------------------------- #
# Path 2: streaming kernel over N tiles with a (K, 128) accumulator.
# --------------------------------------------------------------------------- #
def _reg_l1_stream_kernel(scores_ref, ind_ref, tgt_ref, loss_ref, acc_ref):
    # scores_ref: (1, TS, 128) one N-tile; acc_ref: (K, 128) f32 window accumulator
    n = pl.program_id(1)
    tile = scores_ref[0].astype(jnp.float32)               # (TS, 128)
    idx = ind_ref[0]                                        # (K, 1)
    ts, lanes = tile.shape

    @pl.when(n == 0)
    def _init():
        acc_ref[...] = jnp.zeros_like(acc_ref)

    base = n * (ts * lanes)
    col = (jax.lax.broadcasted_iota(jnp.int32, (ts, lanes), 0) * lanes
           + jax.lax.broadcasted_iota(jnp.int32, (ts, lanes), 1) + base)
    sel = jnp.where(col[None, :, :] == idx[:, :, None], tile[None, :, :], 0.0)  # (K,TS,128)
    # accumulate per-lane; the cross-lane (XLU) reduce happens once, in finalize
    acc_ref[...] += jnp.sum(sel, axis=1)                    # -> (K, 128)

    @pl.when(n == pl.num_programs(1) - 1)
    def _finalize():
        tgt = tgt_ref[0].astype(jnp.float32)                # (K, 1)
        pred = jnp.sum(acc_ref[...], axis=1, keepdims=True) # single lane reduce per row
        loss_ref[...] = jnp.sum(jnp.abs(pred - tgt), axis=0, keepdims=True)[None]


# --------------------------------------------------------------------------- #
# Path 3: scalar-prefetch gather (K << N): only DMA the (8,128) window per index.
# --------------------------------------------------------------------------- #
def _reg_l1_gather_kernel(blk_ref, off_ref, scores_ref, pred_ref):
    # blk_ref/off_ref: (B, K) int32 in SMEM (scalar prefetch): ind//1024, ind%1024
    # scores_ref: (1, 8, 128) window containing the gathered element
    # pred_ref:   (1, 1, 1)   -> pred for flat index b*K + k
    b = pl.program_id(0)
    k = pl.program_id(1)
    win = scores_ref[0].astype(jnp.float32)                 # (8, 128)
    off = off_ref[b, k]                                      # offset within the window
    col = (jax.lax.broadcasted_iota(jnp.int32, (_SUBLANES, _LANES), 0) * _LANES
           + jax.lax.broadcasted_iota(jnp.int32, (_SUBLANES, _LANES), 1))
    sel = jnp.where(col == off, win, 0.0)
    pred_ref[...] = jnp.sum(sel, keepdims=True)[None]


def _gather_call(scores3, ind, target, B, N, K):
    # Clip so ind//1024 can never become an out-of-bounds block index (Mosaic does
    # not bounds-check VMEM); valid callers have ind in [0, N) anyway.
    ind_c = jnp.clip(ind.astype(jnp.int32), 0, N - 1)
    # Sort per row so duplicate / nearby indices hit the same resident block
    # (the pipeline skips the re-DMA when the block index repeats).
    order = jnp.argsort(ind_c, axis=1)
    ind_s = jnp.take_along_axis(ind_c, order, axis=1)
    tgt_s = jnp.take_along_axis(target.astype(jnp.float32), order, axis=1)
    blk = ind_s // (_SUBLANES * _LANES)
    off = ind_s % (_SUBLANES * _LANES)

    preds = pl.pallas_call(
        _reg_l1_gather_kernel,
        out_shape=jax.ShapeDtypeStruct((B * K, 1, 1), jnp.float32),
        grid_spec=pltpu.PrefetchScalarGridSpec(
            num_scalar_prefetch=2,
            grid=(B, K),
            in_specs=[
                pl.BlockSpec((1, _SUBLANES, _LANES),
                             lambda b, k, blk, off: (b, blk[b, k], 0)),
            ],
            out_specs=pl.BlockSpec((1, 1, 1),
                                   lambda b, k, blk, off: (b * K + k, 0, 0)),
        ),
        compiler_params=pltpu.CompilerParams(
            dimension_semantics=("parallel", "arbitrary"),
            vmem_limit_bytes=16 * 1024 * 1024,
        ),
    )(blk, off, scores3)

    # tiny epilogue in XLA: |pred - target| summed to the scalar loss
    return jnp.sum(jnp.abs(preds.reshape(B, K) - tgt_s))


# --------------------------------------------------------------------------- #
# Wrapper
# --------------------------------------------------------------------------- #
def reg_l1_loss(output, ind, target, *, variant="auto", tile_bytes=_TILE_BYTES):
    """output: (B, N), ind: (B, K) int, target: (B, K) -> scalar f32 loss."""
    B, N = output.shape
    K = ind.shape[1]
    S = -(-N // _LANES)

    # tile sublanes per grid step: ~tile_bytes of scores, capped so the
    # (K, TS, 128) f32 select temporary stays small.
    ts = tile_bytes // (_LANES * 4)
    ts = min(ts, max(1, _SELECT_BYTES_CAP // (K * _LANES * 4)))
    ts = max(_SUBLANES, (ts // _SUBLANES) * _SUBLANES)

    if variant == "auto":
        if S <= ts:
            variant = "row"
        elif N >= 8192 * K:
            variant = "gather"
        else:
            variant = "stream"
    if variant not in ("row", "stream", "gather"):
        raise ValueError(f"unknown variant {variant!r}")

    # Sublane-dense layout: (B, N) -> (B, S, 128), explicit zero padding.
    # Keep the ORIGINAL dtype in HBM; cast to f32 inside the kernel.
    pad = S * _LANES - N
    scores = output if pad == 0 else jnp.pad(output, ((0, 0), (0, pad)))
    scores3 = scores.reshape(B, S, _LANES)

    if variant == "gather":
        s8 = -(-S // _SUBLANES) * _SUBLANES
        if s8 != S:
            scores3 = jnp.pad(scores3, ((0, 0), (0, s8 - S), (0, 0)))
        return _gather_call(scores3, ind, target, B, N, K)

    ind3 = ind.astype(jnp.int32).reshape(B, K, 1)
    tgt3 = target.astype(jnp.float32).reshape(B, K, 1)

    if variant == "row":
        per_batch = pl.pallas_call(
            _reg_l1_row_kernel,
            out_shape=jax.ShapeDtypeStruct((B, 1, 1), jnp.float32),
            grid_spec=pltpu.PrefetchScalarGridSpec(
                num_scalar_prefetch=0,
                grid=(B,),
                in_specs=[
                    pl.BlockSpec((1, S, _LANES), lambda b: (b, 0, 0)),
                    pl.BlockSpec((1, K, 1), lambda b: (b, 0, 0)),
                    pl.BlockSpec((1, K, 1), lambda b: (b, 0, 0)),
                ],
                out_specs=pl.BlockSpec((1, 1, 1), lambda b: (b, 0, 0)),
            ),
            compiler_params=pltpu.CompilerParams(
                dimension_semantics=("parallel",),
                vmem_limit_bytes=_vmem_limit(
                    2 * S * _LANES * 4 + 4 * K * S * _LANES * 4),
            ),
        )(scores3, ind3, tgt3)
        return jnp.sum(per_batch)

    # streaming path: pad S to a multiple of the tile so every block is fully real
    s_pad = -(-S // ts) * ts
    if s_pad != S:
        scores3 = jnp.pad(scores3, ((0, 0), (0, s_pad - S), (0, 0)))
    num_s = s_pad // ts

    per_batch = pl.pallas_call(
        _reg_l1_stream_kernel,
        out_shape=jax.ShapeDtypeStruct((B, 1, 1), jnp.float32),
        grid_spec=pltpu.PrefetchScalarGridSpec(
            num_scalar_prefetch=0,
            grid=(B, num_s),
            in_specs=[
                pl.BlockSpec((1, ts, _LANES), lambda b, n: (b, n, 0)),
                pl.BlockSpec((1, K, 1), lambda b, n: (b, 0, 0)),
                pl.BlockSpec((1, K, 1), lambda b, n: (b, 0, 0)),
            ],
            out_specs=pl.BlockSpec((1, 1, 1), lambda b, n: (b, 0, 0)),
            scratch_shapes=[pltpu.VMEM((K, _LANES), jnp.float32)],
        ),
        compiler_params=pltpu.CompilerParams(
            dimension_semantics=("parallel", "arbitrary"),
            vmem_limit_bytes=_vmem_limit(
                2 * ts * _LANES * 4 + 4 * K * ts * _LANES * 4),
        ),
    )(scores3, ind3, tgt3)
    return jnp.sum(per_batch)


if __name__ == "__main__":
    key = jax.random.PRNGKey(0)
    k1, k2, k3 = jax.random.split(key, 3)

    def ref_loss(output, ind, target):
        pred = jnp.take_along_axis(output, ind, axis=1)
        return jnp.sum(jnp.abs(pred - target))

    # 1) shapes implied by the module's forward: single-pass ("row") path.
    B, N, K = 2, 1024, 8
    output = jax.random.normal(k1, (B, N), dtype=jnp.float32)
    ind = jax.random.randint(k2, (B, K), 0, N, dtype=jnp.int32)
    target = jax.random.normal(k3, (B, K), dtype=jnp.float32)
    loss = jax.block_until_ready(reg_l1_loss(output, ind, target))
    ref = ref_loss(output, ind, target)
    assert jnp.allclose(loss, ref, rtol=1e-5, atol=1e-5), (loss, ref)

    # 2) multi-tile streaming path (small tile forces 2 N-tiles + accumulator).
    B2, N2, K2 = 2, 4096, 4
    o2 = jax.random.normal(k1, (B2, N2), dtype=jnp.float32)
    i2 = jax.random.randint(k2, (B2, K2), 0, N2, dtype=jnp.int32)
    t2 = jax.random.normal(k3, (B2, K2), dtype=jnp.float32)
    loss2 = jax.block_until_ready(
        reg_l1_loss(o2, i2, t2, variant="stream", tile_bytes=8192))
    ref2 = ref_loss(o2, i2, t2)
    assert jnp.allclose(loss2, ref2, rtol=1e-5, atol=1e-5), (loss2, ref2)

    # 3) scalar-prefetch gather path (K << N regime).
    loss3 = jax.block_until_ready(reg_l1_loss(o2, i2, t2, variant="gather"))
    assert jnp.allclose(loss3, ref2, rtol=1e-5, atol=1e-5), (loss3, ref2)

    print("KERNEL_OK")
</pallas_src>

<mosaic_0001>
module attributes {stable_mosaic.version = 11 : i64} {
  func.func @_reg_l1_row_kernel(%arg0: i32, %arg1: memref<1x8x128xf32, #tpu.memory_space<vmem>>, %arg2: memref<1x8x1xi32, #tpu.memory_space<vmem>>, %arg3: memref<1x8x1xf32, #tpu.memory_space<vmem>>, %arg4: memref<1x1x1xf32, #tpu.memory_space<vmem>>) attributes {dimension_semantics = [#tpu.dimension_semantics<parallel>], iteration_bounds = array<i64: 2>, scalar_prefetch = 0 : i64, scratch_operands = 0 : i64, tpu.core_type = #tpu.core_type<tc>, window_params = [{transform_indices = @transform_0, window_bounds = array<i64: 1, 8, 128>}, {transform_indices = @transform_1, window_bounds = array<i64: 1, 8, 1>}, {transform_indices = @transform_2, window_bounds = array<i64: 1, 8, 1>}, {transform_indices = @transform_3, window_bounds = array<i64: 1, 1, 1>}]} {
    %c0 = arith.constant 0 : index
    %c0_0 = arith.constant 0 : index
    %c0_1 = arith.constant 0 : index
    %0 = vector.load %arg1[%c0, %c0_0, %c0_1] : memref<1x8x128xf32, #tpu.memory_space<vmem>>, vector<1x8x128xf32>
    %1 = vector.shape_cast %0 : vector<1x8x128xf32> to vector<8x128xf32>
    %c0_2 = arith.constant 0 : index
    %c0_3 = arith.constant 0 : index
    %c0_4 = arith.constant 0 : index
    %2 = vector.load %arg2[%c0_2, %c0_3, %c0_4] : memref<1x8x1xi32, #tpu.memory_space<vmem>>, vector<1x8x1xi32>
    %3 = vector.shape_cast %2 : vector<1x8x1xi32> to vector<8x1xi32>
    %c0_5 = arith.constant 0 : index
    %c0_6 = arith.constant 0 : index
    %c0_7 = arith.constant 0 : index
    %4 = vector.load %arg3[%c0_5, %c0_6, %c0_7] : memref<1x8x1xf32, #tpu.memory_space<vmem>>, vector<1x8x1xf32>
    %5 = vector.shape_cast %4 : vector<1x8x1xf32> to vector<8x1xf32>
    %6 = tpu.iota {dimensions = array<i32: 0>} : vector<8x128xi32>
    %c128_i32 = arith.constant 128 : i32
    %7 = vector.broadcast %c128_i32 : i32 to vector<8x128xi32>
    %8 = arith.muli %6, %7 : vector<8x128xi32>
    %9 = tpu.iota {dimensions = array<i32: 1>} : vector<8x128xi32>
    %10 = arith.addi %8, %9 : vector<8x128xi32>
    %11 = vector.shape_cast %10 : vector<8x128xi32> to vector<1x8x128xi32>
    %12 = vector.shape_cast %3 : vector<8x1xi32> to vector<8x1x1xi32>
    %13 = vector.broadcast %11 : vector<1x8x128xi32> to vector<8x8x128xi32>
    %14 = vector.broadcast %12 : vector<8x1x1xi32> to vector<8x8x128xi32>
    %15 = arith.cmpi eq, %13, %14 : vector<8x8x128xi32>
    %16 = vector.shape_cast %1 : vector<8x128xf32> to vector<1x8x128xf32>
    %cst = arith.constant 0.000000e+00 : f32
    %17 = vector.shape_cast %16 : vector<1x8x128xf32> to vector<1x8x128xf32>
    %18 = vector.broadcast %17 : vector<1x8x128xf32> to vector<8x8x128xf32>
    %19 = vector.broadcast %cst : f32 to vector<8x8x128xf32>
    %20 = arith.select %15, %18, %19 : vector<8x8x128xi1>, vector<8x8x128xf32>
    %cst_8 = arith.constant dense<0.000000e+00> : vector<8x128xf32>
    %21 = vector.multi_reduction <add>, %20, %cst_8 [1] : vector<8x8x128xf32> to vector<8x128xf32>
    %cst_9 = arith.constant dense<0.000000e+00> : vector<8xf32>
    %22 = vector.multi_reduction <add>, %21, %cst_9 [1] : vector<8x128xf32> to vector<8xf32>
    %23 = vector.shape_cast %22 : vector<8xf32> to vector<8x1xf32>
    %24 = arith.subf %23, %5 : vector<8x1xf32>
    %25 = math.absf %24 : vector<8x1xf32>
    %cst_10 = arith.constant dense<0.000000e+00> : vector<1xf32>
    %26 = vector.multi_reduction <add>, %25, %cst_10 [0] : vector<8x1xf32> to vector<1xf32>
    %27 = vector.shape_cast %26 : vector<1xf32> to vector<1x1xf32>
    %28 = vector.shape_cast %27 : vector<1x1xf32> to vector<1x1x1xf32>
    %c0_11 = arith.constant 0 : index
    %c0_12 = arith.constant 0 : index
    %c0_13 = arith.constant 0 : index
    %29 = vector.load %arg4[%c0_11, %c0_12, %c0_13] : memref<1x1x1xf32, #tpu.memory_space<vmem>>, vector<1x1x1xf32>
    tpu.vector_store %arg4[%c0_11, %c0_12, %c0_13], %28 {strides = array<i32>} : memref<1x1x1xf32, #tpu.memory_space<vmem>>, vector<1x1x1xf32>,
    return
  }
  func.func @transform_0(%arg0: i32) -> (i32, i32, i32) {
    %c0_i32 = arith.constant 0 : i32
    %c0_i32_0 = arith.constant 0 : i32
    %c0_i32_1 = arith.constant 0 : i32
    return %arg0, %c0_i32, %c0_i32_0 : i32, i32, i32
  }
  func.func @transform_1(%arg0: i32) -> (i32, i32, i32) {
    %c0_i32 = arith.constant 0 : i32
    %c0_i32_0 = arith.constant 0 : i32
    %c0_i32_1 = arith.constant 0 : i32
    return %arg0, %c0_i32, %c0_i32_0 : i32, i32, i32
  }
  func.func @transform_2(%arg0: i32) -> (i32, i32, i32) {
    %c0_i32 = arith.constant 0 : i32
    %c0_i32_0 = arith.constant 0 : i32
    %c0_i32_1 = arith.constant 0 : i32
    return %arg0, %c0_i32, %c0_i32_0 : i32, i32, i32
  }
  func.func @transform_3(%arg0: i32) -> (i32, i32, i32) {
    %c0_i32 = arith.constant 0 : i32
    %c0_i32_0 = arith.constant 0 : i32
    %c0_i32_1 = arith.constant 0 : i32
    return %arg0, %c0_i32, %c0_i32_0 : i32, i32, i32
  }
}

</mosaic_0001>

<llo_original>
// kernel: tpu_custom_call.1
$region0: #{tpu_custom_call.1}
  #allocation0 [shape = 'u32[]', space=smem, size = 0x4, offset = 0x4, fixed_abs, tag = 'smem constant byte address 0x4 - core index']
  #allocation1 [shape = 'u32[144,128]{1,0:T(1,128)}', space=vmem, size = 0x12000, scoped, tag = 'internal scratch']
  %s0 = inlined_call_operand.vmem [shape: f32[2,8,128], index: 0, kind: input, shape index: {}]
  %s1 = inlined_call_operand.vmem [shape: s32[2,8,1], index: 1, kind: input, shape index: {}]
  %s2 = inlined_call_operand.vmem [shape: f32[2,8,1], index: 2, kind: input, shape index: {}]
  %s3 = inlined_call_operand.vmem [shape: f32[2,1,1], index: 3, kind: output, shape index: {}]
  %s4 = sld [smem:[#allocation0]]
  $region45: #{tpu_custom_call.1} parent=0
    _
  %s6 = ssub.s32 1, %s4
  %s7 = scalar_select 0, %s6, %s4
  loop: start=0, step=1, limit=4
  $region2: #{tpu_custom_call.1} parent=0 // loop_pre_header
    _
  $region3: #{tpu_custom_call.1} parent=0 // loop_header
    %s9 = sphi 0, %s13
    %p10 = scmp.ge.s32.totalorder %s9, 4
    %s19 = sphi 0, %s21
    %s22 = sphi 0, %s19
    %s23 = sphi 0, %s22
    %s39 = sphi 0, %s23
    %s45 = sphi 0, %s47
    %s48 = sphi 0, %s45
    %s49 = sphi 0, %s48
    %s65 = sphi 0, %s49
    %s71 = sphi 0, %s73
    %s74 = sphi 0, %s71
    %s75 = sphi 0, %s74
    %s91 = sphi 0, %s75
    %s97 = sphi 0, %s99
    %s100 = sphi 0, %s97
    %s101 = sphi 0, %s100
    %s117 = sphi 0, %s101
  $region4: #{tpu_custom_call.1} parent=0 // loop_header_branch
    %12 = sbr.rel (%p10) target = $region8
  $region5: #{tpu_custom_call.1} parent=0 // loop_body
    %s14 = ssub.s32 %s9, 1
    %s15 = ssub.s32 %s9, 2
    %s16 = sadd.s32 %s9, 1
    %s17 = ssub.s32 %s9, %s16
    %p18 = scmp.eq.s32.totalorder %s17, 0
    %s20 = sadd.s32 %s19, 1
    %s21 = scalar_select %p18, %s19, %s20
    %p24 = pneg %p18
    %p25 = scmp.eq.s32.totalorder %s9, 1
    %p26 = por %p24, %p25
    %p27 = scmp.ne.s32.totalorder %s19, %s22
    %p28 = scmp.eq.s32.totalorder %s9, 0
    %p29 = por %p27, %p28
    %p30 = scmp.ne.s32.totalorder %s19, %s22
    %p31 = scmp.eq.s32.totalorder %s14, 1
    %p32 = por %p30, %p31
    %p33 = scmp.ne.s32.totalorder %s22, %s23
    %p34 = scmp.eq.s32.totalorder %s14, 0
    %p35 = por %p33, %p34
    %p36 = scmp.ne.s32.totalorder %s22, %s23
    %p37 = scmp.eq.s32.totalorder %s15, 1
    %p38 = por %p36, %p37
    %p40 = scmp.ne.s32.totalorder %s23, %s39
    %p41 = scmp.eq.s32.totalorder %s15, 0
    %p42 = por %p40, %p41
    %s43 = ssub.s32 %s9, %s16
    %p44 = scmp.eq.s32.totalorder %s43, 0
    %s46 = sadd.s32 %s45, 1
    %s47 = scalar_select %p44, %s45, %s46
    %p50 = pneg %p44
    %p51 = scmp.eq.s32.totalorder %s9, 1
    %p52 = por %p50, %p51
    %p53 = scmp.ne.s32.totalorder %s45, %s48
    %p54 = scmp.eq.s32.totalorder %s9, 0
    %p55 = por %p53, %p54
    %p56 = scmp.ne.s32.totalorder %s45, %s48
    %p57 = scmp.eq.s32.totalorder %s14, 1
    %p58 = por %p56, %p57
    %p59 = scmp.ne.s32.totalorder %s48, %s49
    %p60 = scmp.eq.s32.totalorder %s14, 0
    %p61 = por %p59, %p60
    %p62 = scmp.ne.s32.totalorder %s48, %s49
    %p63 = scmp.eq.s32.totalorder %s15, 1
    %p64 = por %p62, %p63
    %p66 = scmp.ne.s32.totalorder %s49, %s65
    %p67 = scmp.eq.s32.totalorder %s15, 0
    %p68 = por %p66, %p67
    %s69 = ssub.s32 %s9, %s16
    %p70 = scmp.eq.s32.totalorder %s69, 0
    %s72 = sadd.s32 %s71, 1
    %s73 = scalar_select %p70, %s71, %s72
    %p76 = pneg %p70
    %p77 = scmp.eq.s32.totalorder %s9, 1
    %p78 = por %p76, %p77
    %p79 = scmp.ne.s32.totalorder %s71, %s74
    %p80 = scmp.eq.s32.totalorder %s9, 0
    %p81 = por %p79, %p80
    %p82 = scmp.ne.s32.totalorder %s71, %s74
    %p83 = scmp.eq.s32.totalorder %s14, 1
    %p84 = por %p82, %p83
    %p85 = scmp.ne.s32.totalorder %s74, %s75
    %p86 = scmp.eq.s32.totalorder %s14, 0
    %p87 = por %p85, %p86
    %p88 = scmp.ne.s32.totalorder %s74, %s75
    %p89 = scmp.eq.s32.totalorder %s15, 1
    %p90 = por %p88, %p89
    %p92 = scmp.ne.s32.totalorder %s75, %s91
    %p93 = scmp.eq.s32.totalorder %s15, 0
    %p94 = por %p92, %p93
    %s95 = ssub.s32 %s9, %s16
    %p96 = scmp.eq.s32.totalorder %s95, 0
    %s98 = sadd.s32 %s97, 1
    %s99 = scalar_select %p96, %s97, %s98
    %p102 = pneg %p96
    %p103 = scmp.eq.s32.totalorder %s9, 1
    %p104 = por %p102, %p103
    %p105 = scmp.ne.s32.totalorder %s97, %s100
    %p106 = scmp.eq.s32.totalorder %s9, 0
    %p107 = por %p105, %p106
    %p108 = scmp.ne.s32.totalorder %s97, %s100
    %p109 = scmp.eq.s32.totalorder %s14, 1
    %p110 = por %p108, %p109
    %p111 = scmp.ne.s32.totalorder %s100, %s101
    %p112 = scmp.eq.s32.totalorder %s14, 0
    %p113 = por %p111, %p112
    %p114 = scmp.ne.s32.totalorder %s100, %s101
    %p115 = scmp.eq.s32.totalorder %s15, 1
    %p116 = por %p114, %p115
    %p118 = scmp.ne.s32.totalorder %s101, %s117
    %p119 = scmp.eq.s32.totalorder %s15, 0
    %p120 = por %p118, %p119
    %p121 = scmp.le.s32.totalorder 1, %s9
    %p122 = scmp.lt.s32.totalorder %s9, 3
    %p123 = pnand %p121, %p122
    %p124 = pneg %p123
    // Predicated region
    $region9: #{tpu_custom_call.1} parent=5 // pred_check
      _
    $region10: #{tpu_custom_call.1} parent=5 // pred_check_branch
      %126 = sbr.rel (%p123) target = $region12
    $region11: #{tpu_custom_call.1} parent=5 // pred_region
      %s127 = ssub.s32 %s9, 1
    $region12: #{tpu_custom_call.1} parent=5 // pred_fallthru
      _
    %p128 = scmp.lt.s32.totalorder %s9, 2
    // Predicated region
    $region13: #{tpu_custom_call.1} parent=5 // pred_check
      %p129 = pneg %p128
    $region14: #{tpu_custom_call.1} parent=5 // pred_check_branch
      %131 = sbr.rel (%p129) target = $region16
    $region15: #{tpu_custom_call.1} parent=5 // pred_region
      // Predicated region
      $region17: #{tpu_custom_call.1} parent=15 // pred_check
        %p132 = pneg %p29
      $region18: #{tpu_custom_call.1} parent=15 // pred_check_branch
        %134 = sbr.rel (%p132) target = $region20
      $region19: #{tpu_custom_call.1} parent=15 // pred_region
        %p135 = scmp.lt.s32.totalorder %s9, 1
        %s136 = scalar_select %p135, %s9, 1
        %s137 = smul.addr %s136, 8
        %s138 = scalar_lea.vmem %s0, %s137
      $region20: #{tpu_custom_call.1} parent=15 // pred_fallthru
        _
      // Predicated region
      $region21: #{tpu_custom_call.1} parent=15 // pred_check
        %p139 = pneg %p55
      $region22: #{tpu_custom_call.1} parent=15 // pred_check_branch
        %141 = sbr.rel (%p139) target = $region24
      $region23: #{tpu_custom_call.1} parent=15 // pred_region
        %p142 = scmp.lt.s32.totalorder %s9, 1
        %s143 = scalar_select %p142, %s9, 1
        %s144 = smul.addr %s143, 8
        %s145 = scalar_lea.vmem %s1, %s144
      $region24: #{tpu_custom_call.1} parent=15 // pred_fallthru
        _
      // Predicated region
      $region25: #{tpu_custom_call.1} parent=15 // pred_check
        %p146 = pneg %p81
      $region26: #{tpu_custom_call.1} parent=15 // pred_check_branch
        %148 = sbr.rel (%p146) target = $region28
      $region27: #{tpu_custom_call.1} parent=15 // pred_region
        %p149 = scmp.lt.s32.totalorder %s9, 1
        %s150 = scalar_select %p149, %s9, 1
        %s151 = smul.addr %s150, 8
        %s152 = scalar_lea.vmem %s2, %s151
      $region28: #{tpu_custom_call.1} parent=15 // pred_fallthru
        _
    $region16: #{tpu_custom_call.1} parent=5 // pred_fallthru
      _
    %p153 = scmp.le.s32.totalorder 1, %s9
    %p154 = scmp.lt.s32.totalorder %s9, 3
    %p155 = pnand %p153, %p154
    %p156 = pneg %p155
    // Predicated region
    $region29: #{tpu_custom_call.1} parent=5 // pred_check
      _
    $region30: #{tpu_custom_call.1} parent=5 // pred_check_branch
      %158 = sbr.rel (%p155) target = $region32
    $region31: #{tpu_custom_call.1} parent=5 // pred_region
      %s159 = ssub.s32 %s9, 1
      %p160 = scmp.lt.s32.totalorder %s14, 1
      %s161 = scalar_select %p160, %s14, 1
      %s162 = smul.addr %s161, 8
      %s163 = scalar_lea.vmem %s0, %s162
      %p164 = pneg %p35
      %p165 = pneg %p32
      %p166 = scmp.lt.s32.totalorder %s14, 1
      %s167 = scalar_select %p166, %s14, 1
      %s168 = smul.addr %s167, 8
      %s169 = scalar_lea.vmem %s1, %s168
      %p170 = pneg %p61
      %p171 = pneg %p58
      %p172 = scmp.lt.s32.totalorder %s14, 1
      %s173 = scalar_select %p172, %s14, 1
      %s174 = smul.addr %s173, 8
      %s175 = scalar_lea.vmem %s2, %s174
      %p176 = pneg %p87
      %p177 = pneg %p84
      %p178 = pneg %p113
      %p179 = pneg %p110
      %p180 = scmp.lt.s32.totalorder %s14, 1
      %s181 = scalar_select %p180, %s14, 1
      %s182 = scalar_lea.vmem %s3, %s181
      %p183 = scmp.lt.s32.totalorder %s14, 1
      %s184 = scalar_select %p183, %s14, 1
      %s185 = smul.addr %s184, 8
      %s186 = scalar_lea.vmem %s0, %s185
      %p187 = scmp.lt.s32.totalorder %s14, 1
      %s188 = scalar_select %p187, %s14, 1
      %s189 = smul.addr %s188, 8
      %s190 = scalar_lea.vmem %s1, %s189
      %p191 = scmp.lt.s32.totalorder %s14, 1
      %s192 = scalar_select %p191, %s14, 1
      %s193 = smul.addr %s192, 8
      %s194 = scalar_lea.vmem %s2, %s193
      %p195 = scmp.lt.s32.totalorder %s14, 1
      %s196 = scalar_select %p195, %s14, 1
      %s197 = scalar_lea.vmem %s3, %s196
      %v198 = vld [vmem:[%s186] sm:$0xff]
      %v199 = vld [vmem:[%s190] sm:$0xff]
      %v200 = vld [vmem:[%s194] sm:$0xff]
      %v201 = vlaneseq
      %v202 = vshrl.u32 %v201, 7
      %v203 = vmul.u32 %v202, 128
      %v204 = vlaneseq
      %v205 = vand.u32 %v204, 127
      %v206 = vadd.s32 %v203, %v205
      %v207 = vcombine.high %v199, %v199
      %v209 = vunpack.c.l.s4 1966171168
      %v210 = vunpack.c.0.s8 %v209
      %v211 = vlaneseq
      %v212 = vshrl.u32 %v211, 7
      %v213 = vsub.s32 %v210, %v212
      %v214 = vrot.slane %v199, %v213
      %v216 = vunpack.c.l.s4 1966171168
      %v217 = vunpack.c.0.s8 %v216
      %v218 = vlaneseq
      %v219 = vshrl.u32 %v218, 7
      %v220 = vsub.s32 %v217, %v219
      %v221 = vrot.slane %v207, %v220
      %v222 = vcombine.high %v214, %v214
      %v223 = vcombine.high %v221, %v221
      %v225 = vunpack.c.l.s4 1966171168
      %v226 = vunpack.c.0.s8 %v225
      %v227 = vlaneseq
      %v228 = vshrl.u32 %v227, 7
      %v229 = vsub.s32 %v226, %v228
      %v230 = vrot.slane %v214, %v229
      %v232 = vunpack.c.l.s4 1966171168
      %v233 = vunpack.c.0.s8 %v232
      %v234 = vlaneseq
      %v235 = vshrl.u32 %v234, 7
      %v236 = vsub.s32 %v233, %v235
      %v237 = vrot.slane %v221, %v236
      %v239 = vunpack.c.l.s4 1966171168
      %v240 = vunpack.c.0.s8 %v239
      %v241 = vlaneseq
      %v242 = vshrl.u32 %v241, 7
      %v243 = vsub.s32 %v240, %v242
      %v244 = vrot.slane %v222, %v243
      %v246 = vunpack.c.l.s4 1966171168
      %v247 = vunpack.c.0.s8 %v246
      %v248 = vlaneseq
      %v249 = vshrl.u32 %v248, 7
      %v250 = vsub.s32 %v247, %v249
      %v251 = vrot.slane %v223, %v250
      %v252 = vcombine.high %v230, %v230
      %v253 = vcombine.high %v237, %v237
      %v254 = vcombine.high %v244, %v244
      %v255 = vcombine.high %v251, %v251
      %v256 = vlaneseq
      %v257 = vshrl.u32 %v256, 7
      %v258 = vsub.s32 0, %v257
      %v259 = vrot.slane %v230, %v258
      %v260 = vlaneseq
      %v261 = vshrl.u32 %v260, 7
      %v262 = vsub.s32 0, %v261
      %v263 = vrot.slane %v244, %v262
      %v264 = vlaneseq
      %v265 = vshrl.u32 %v264, 7
      %v266 = vsub.s32 0, %v265
      %v267 = vrot.slane %v252, %v266
      %v268 = vlaneseq
      %v269 = vshrl.u32 %v268, 7
      %v270 = vsub.s32 0, %v269
      %v271 = vrot.slane %v254, %v270
      %v272 = vlaneseq
      %v273 = vshrl.u32 %v272, 7
      %v274 = vsub.s32 0, %v273
      %v275 = vrot.slane %v237, %v274
      %v276 = vlaneseq
      %v277 = vshrl.u32 %v276, 7
      %v278 = vsub.s32 0, %v277
      %v279 = vrot.slane %v251, %v278
      %v280 = vlaneseq
      %v281 = vshrl.u32 %v280, 7
      %v282 = vsub.s32 0, %v281
      %v283 = vrot.slane %v253, %v282
      %v284 = vlaneseq
      %v285 = vshrl.u32 %v284, 7
      %v286 = vsub.s32 0, %v285
      %v287 = vrot.slane %v255, %v286
      %288 = vset.pattern.permute.xlu0 0
      %289 = vperm.xlu0 %288, %v259
      %v290 = vpop.permute.xlu0 %289
      %291 = vset.pattern.permute.xlu0 0
      %292 = vperm.xlu0 %291, %v263
      %v293 = vpop.permute.xlu0 %292
      %294 = vset.pattern.permute.xlu0 0
      %295 = vperm.xlu0 %294, %v267
      %v296 = vpop.permute.xlu0 %295
      %297 = vset.pattern.permute.xlu0 0
      %298 = vperm.xlu0 %297, %v271
      %v299 = vpop.permute.xlu0 %298
      %300 = vset.pattern.permute.xlu0 0
      %301 = vperm.xlu0 %300, %v275
      %v302 = vpop.permute.xlu0 %301
      %303 = vset.pattern.permute.xlu0 0
      %304 = vperm.xlu0 %303, %v279
      %v305 = vpop.permute.xlu0 %304
      %306 = vset.pattern.permute.xlu0 0
      %307 = vperm.xlu0 %306, %v283
      %v308 = vpop.permute.xlu0 %307
      %309 = vset.pattern.permute.xlu0 0
      %310 = vperm.xlu0 %309, %v287
      %v311 = vpop.permute.xlu0 %310
      %vm312 = vcmp.eq.s32.totalorder %v206, %v290
      %vm313 = vcmp.eq.s32.totalorder %v206, %v293
      %vm314 = vcmp.eq.s32.totalorder %v206, %v296
      %vm315 = vcmp.eq.s32.totalorder %v206, %v299
      %vm316 = vcmp.eq.s32.totalorder %v206, %v302
      %vm317 = vcmp.eq.s32.totalorder %v206, %v305
      %vm318 = vcmp.eq.s32.totalorder %v206, %v308
      %vm319 = vcmp.eq.s32.totalorder %v206, %v311
      %v320 = vsel %vm312, %v198, 0.0
      %v321 = vsel %vm313, %v198, 0.0
      %v322 = vsel %vm314, %v198, 0.0
      %v323 = vsel %vm315, %v198, 0.0
      %v324 = vsel %vm316, %v198, 0.0
      %v325 = vsel %vm317, %v198, 0.0
      %v326 = vsel %vm318, %v198, 0.0
      %v327 = vsel %vm319, %v198, 0.0
      %v328 = vrot.slane %v320, 4
      %v329 = vadd.f32 %v320, %v328
      %v330 = vrot.slane %v329, 2
      %v331 = vadd.f32 %v329, %v330
      %v332 = vrot.slane %v331, 1
      %v333 = vadd.f32 %v331, %v332
      %v334 = vrot.slane %v321, 4
      %v335 = vadd.f32 %v321, %v334
      %v336 = vrot.slane %v335, 2
      %v337 = vadd.f32 %v335, %v336
      %v338 = vrot.slane %v337, 1
      %v339 = vadd.f32 %v337, %v338
      %v340 = vrot.slane %v322, 4
      %v341 = vadd.f32 %v322, %v340
      %v342 = vrot.slane %v341, 2
      %v343 = vadd.f32 %v341, %v342
      %v344 = vrot.slane %v343, 1
      %v345 = vadd.f32 %v343, %v344
      %v346 = vrot.slane %v323, 4
      %v347 = vadd.f32 %v323, %v346
      %v348 = vrot.slane %v347, 2
      %v349 = vadd.f32 %v347, %v348
      %v350 = vrot.slane %v349, 1
      %v351 = vadd.f32 %v349, %v350
      %v352 = vrot.slane %v324, 4
      %v353 = vadd.f32 %v324, %v352
      %v354 = vrot.slane %v353, 2
      %v355 = vadd.f32 %v353, %v354
      %v356 = vrot.slane %v355, 1
      %v357 = vadd.f32 %v355, %v356
      %v358 = vrot.slane %v325, 4
      %v359 = vadd.f32 %v325, %v358
      %v360 = vrot.slane %v359, 2
      %v361 = vadd.f32 %v359, %v360
      %v362 = vrot.slane %v361, 1
      %v363 = vadd.f32 %v361, %v362
      %v364 = vrot.slane %v326, 4
      %v365 = vadd.f32 %v326, %v364
      %v366 = vrot.slane %v365, 2
      %v367 = vadd.f32 %v365, %v366
      %v368 = vrot.slane %v367, 1
      %v369 = vadd.f32 %v367, %v368
      %v370 = vrot.slane %v327, 4
      %v371 = vadd.f32 %v327, %v370
      %v372 = vrot.slane %v371, 2
      %v373 = vadd.f32 %v371, %v372
      %v374 = vrot.slane %v373, 1
      %v375 = vadd.f32 %v373, %v374
      %vm384 = vcmask 1041409
      %v385 = vsel %vm384, %v339, %v333
      %vm386 = vcmask 1042434
      %v387 = vsel %vm386, %v345, %v385
      %vm388 = vcmask 1043459
      %v389 = vsel %vm388, %v351, %v387
      %vm390 = vcmask 1044484
      %v391 = vsel %vm390, %v357, %v389
      %vm392 = vcmask 1045509
      %v393 = vsel %vm392, %v363, %v391
      %vm394 = vcmask 1046534
      %v395 = vsel %vm394, %v369, %v393
      %vm396 = vcmask 1047559
      %v397 = vsel %vm396, %v375, %v395
      %399 = vadd.xlane.f32.xlu0 %v397
      %v400 = vpop.xlane.xlu0 %399
      %v401 = vsub.f32 %v400, %v200
      %v402 = vand.u32 2147483647, %v401
      %vm403 = vcmask 7168
      %v404 = vsel %vm403, %v402, 0.0
      %v405 = vrot.slane %v404, 4
      %v406 = vadd.f32 %v404, %v405
      %v407 = vrot.slane %v406, 2
      %v408 = vadd.f32 %v406, %v407
      %v409 = vrot.slane %v408, 1
      %v410 = vadd.f32 %v408, %v409
      %vm411 = vcmask 0
      %412 = vst.msk [vmem:[%s197] sm:$0x1] %vm411, %v410
      %p413 = scmp.lt.s32.totalorder %s14, 1
      %s414 = scalar_select %p413, %s14, 1
      %s415 = scalar_lea.vmem %s3, %s414
      // Predicated region
      $region33: #{tpu_custom_call.1} parent=31 // pred_check
        %p416 = pneg %p110
      $region34: #{tpu_custom_call.1} parent=31 // pred_check_branch
        %418 = sbr.rel (%p416) target = $region36
      $region35: #{tpu_custom_call.1} parent=31 // pred_region
        _
      $region36: #{tpu_custom_call.1} parent=31 // pred_fallthru
        _
    $region32: #{tpu_custom_call.1} parent=5 // pred_fallthru
      _
    %p419 = scmp.le.s32.totalorder 2, %s9
    // Predicated region
    $region37: #{tpu_custom_call.1} parent=5 // pred_check
      %p420 = pneg %p419
    $region38: #{tpu_custom_call.1} parent=5 // pred_check_branch
      %422 = sbr.rel (%p420) target = $region40
    $region39: #{tpu_custom_call.1} parent=5 // pred_region
      %s423 = ssub.s32 %s9, 2
      // Predicated region
      $region41: #{tpu_custom_call.1} parent=39 // pred_check
        %p424 = pneg %p116
      $region42: #{tpu_custom_call.1} parent=39 // pred_check_branch
        %426 = sbr.rel (%p424) target = $region44
      $region43: #{tpu_custom_call.1} parent=39 // pred_region
        %p427 = scmp.lt.s32.totalorder %s15, 1
        %s428 = scalar_select %p427, %s15, 1
        %s429 = scalar_lea.vmem %s3, %s428
      $region44: #{tpu_custom_call.1} parent=39 // pred_fallthru
        _
    $region40: #{tpu_custom_call.1} parent=5 // pred_fallthru
      _
  $region6: #{tpu_custom_call.1} parent=0 // loop_footer
    %s13 = sadd.s32 1, %s9
  $region7: #{tpu_custom_call.1} parent=0 // loop_footer_branch
    %8 = sbr.rel target = $region3
  $region8: #{tpu_custom_call.1} parent=0 // loop_exit
    _

</llo_original>
